<compile_context>
chip_gen: v5e
topology: v5e:2x2
jax: 0.10.0
libtpu: 0.0.40
codegen_flags: <defaults>
</compile_context>

<pallas_src>
import math

import numpy as np
import jax
import jax.numpy as jnp
from jax.experimental import pallas as pl
from jax.experimental.pallas import tpu as pltpu

# ----------------------------------------------------------------------------
# constants (match the PyTorch module __init__)
# ----------------------------------------------------------------------------
_CHARB_EPS = 1e-3
_CHARB_EPS2 = _CHARB_EPS * _CHARB_EPS
_PSNR_SCALE = float(10.0 / np.log(10.0))
_GAUSS_K = np.asarray([0.05, 0.25, 0.4, 0.25, 0.05], dtype=np.float64)

_LANE = 512          # lane-dense slab width (multiple of 128)
_BLOCK_ROWS = 512    # sublane rows per grid step (multiple of 8)


def _cdiv(a, b):
    return -(-a // b)


# ----------------------------------------------------------------------------
# point-wise losses (MSE / L1 / Charbonnier): tiled sum-reduction
# ----------------------------------------------------------------------------
def _make_sum_kernel(elem_fn):
    def kernel(x_ref, y_ref, o_ref):
        @pl.when(pl.program_id(0) == 0)
        def _init():
            o_ref[...] = jnp.zeros_like(o_ref)

        # cast to f32 inside the kernel (inputs stay in native dtype in HBM)
        d = x_ref[...].astype(jnp.float32) - y_ref[...].astype(jnp.float32)
        o_ref[...] += jnp.sum(elem_fn(d), axis=0, keepdims=True)

    return kernel


def _pointwise_loss(elem_fn, pad_elem_value):
    kernel = _make_sum_kernel(elem_fn)

    def call(x, y):
        n = int(np.prod(x.shape))
        lane = _LANE if n >= _LANE else 128
        rows = _cdiv(n, lane)
        block_rows = min(_BLOCK_ROWS, rows)
        grid_r = _cdiv(rows, block_rows)
        rows_p = grid_r * block_rows
        pad = rows_p * lane - n

        xf = x.reshape(-1)
        yf = y.reshape(-1)
        if pad:
            xf = jnp.pad(xf, (0, pad))
            yf = jnp.pad(yf, (0, pad))
        x2 = xf.reshape(rows_p, lane)
        y2 = yf.reshape(rows_p, lane)

        out = pl.pallas_call(
            kernel,
            out_shape=jax.ShapeDtypeStruct((1, lane), jnp.float32),
            grid_spec=pltpu.PrefetchScalarGridSpec(
                num_scalar_prefetch=0,
                grid=(grid_r,),
                in_specs=[
                    pl.BlockSpec((block_rows, lane), lambda i: (i, 0)),
                    pl.BlockSpec((block_rows, lane), lambda i: (i, 0)),
                ],
                out_specs=pl.BlockSpec((1, lane), lambda i: (0, 0)),
            ),
            # reduction axis -> "arbitrary" (output block is an accumulator).
            compiler_params=pltpu.CompilerParams(
                dimension_semantics=("arbitrary",)),
        )(x2, y2)

        total = jnp.sum(out)
        if pad and pad_elem_value != 0.0:
            # zero-padded elements contribute elem_fn(0) each; remove exactly.
            total = total - jnp.float32(pad * pad_elem_value)
        return total / jnp.float32(n)

    return call


# ----------------------------------------------------------------------------
# PSNR: per-sample SSE accumulated across a tiled C*H*W axis
# ----------------------------------------------------------------------------
def _psnr_kernel(x_ref, y_ref, o_ref):
    @pl.when(pl.program_id(0) == 0)
    def _init():
        o_ref[...] = jnp.zeros_like(o_ref)

    d = x_ref[...].astype(jnp.float32) - y_ref[...].astype(jnp.float32)
    o_ref[...] += jnp.sum(d * d, axis=1, keepdims=True)          # (B, 1)


def _psnr_loss(x, y):
    assert x.ndim == 4
    b = x.shape[0]
    chw = int(np.prod(x.shape[1:]))
    tk = min(2048, _cdiv(chw, 128) * 128)
    grid_k = _cdiv(chw, tk)
    chw_p = grid_k * tk
    pad = chw_p - chw

    x2 = x.reshape(b, chw)
    y2 = y.reshape(b, chw)
    if pad:
        x2 = jnp.pad(x2, ((0, 0), (0, pad)))
        y2 = jnp.pad(y2, ((0, 0), (0, pad)))

    sse = pl.pallas_call(
        _psnr_kernel,
        out_shape=jax.ShapeDtypeStruct((b, 1), jnp.float32),
        grid_spec=pltpu.PrefetchScalarGridSpec(
            num_scalar_prefetch=0,
            grid=(grid_k,),
            in_specs=[
                pl.BlockSpec((b, tk), lambda k: (0, k)),
                pl.BlockSpec((b, tk), lambda k: (0, k)),
            ],
            out_specs=pl.BlockSpec((b, 1), lambda k: (0, 0)),
        ),
        compiler_params=pltpu.CompilerParams(
            dimension_semantics=("arbitrary",)),
    )(x2, y2)

    mse_b = sse[:, 0] / jnp.float32(chw)                # per-sample MSE
    return jnp.float32(_PSNR_SCALE) * jnp.mean(jnp.log(mse_b + 1e-8))


# ----------------------------------------------------------------------------
# Edge loss: replicate-padded separable Gaussian pyramid step folded into two
# constant matrices (MXU), then Charbonnier.
#   conv_gauss(z) = A z B^T    (A: HxH, B: WxW clamped-Toeplitz of the taps)
#   laplacian(z)  = z - A (4 * Dh (A z B^T) Dw) B^T = z - CH z CWT
#   with CH = 2*A@Dh@A,  CWT = 2*B^T@Dw@B^T  (Dh/Dw = even-index diagonals).
# By linearity: lap(x) - lap(y) = lap(x - y).
# A group of G images is processed per grid step as a (G*H, W) slab with the
# left operator lifted to BH = kron(I_G, CH) (block-diagonal, MXU-friendly).
# ----------------------------------------------------------------------------
def _gauss_toeplitz(n):
    t = np.zeros((n, n), dtype=np.float64)
    for o in range(n):
        for tap in range(5):
            s = min(max(o + tap - 2, 0), n - 1)   # replicate padding == clamp
            t[o, s] += _GAUSS_K[tap]
    return t


def _edge_operators_np(h, w):
    a = _gauss_toeplitz(h)
    bm = _gauss_toeplitz(w)
    dh = np.diag((np.arange(h) % 2 == 0).astype(np.float64))
    dw = np.diag((np.arange(w) % 2 == 0).astype(np.float64))
    ch = 2.0 * (a @ dh @ a)              # (H, H) left operator
    cwt = 2.0 * (bm.T @ dw @ bm.T)       # (W, W) right operator (transposed)
    return ch, cwt


def _edge_kernel(x_ref, y_ref, bh_ref, cwt_ref, o_ref):
    @pl.when(pl.program_id(0) == 0)
    def _init():
        o_ref[...] = jnp.zeros_like(o_ref)

    d = x_ref[...].astype(jnp.float32) - y_ref[...].astype(jnp.float32)  # (G*H, W)
    r = jnp.dot(d, cwt_ref[...], preferred_element_type=jnp.float32)
    t = jnp.dot(bh_ref[...], r, preferred_element_type=jnp.float32)
    e = d - t                                                            # lap(x-y)
    o_ref[...] += jnp.sum(jnp.sqrt(e * e + _CHARB_EPS2), axis=0, keepdims=True)


def _edge_loss(x, y):
    assert x.ndim == 4
    b, c, h, w = x.shape
    n_img = b * c
    n = n_img * h * w

    ch_np, cwt_np = _edge_operators_np(h, w)

    # group size: (g*h) % 8 == 0 and g*h in an MXU-friendly range
    g_unit = 8 // math.gcd(h, 8)           # smallest g with (g*h) % 8 == 0
    g = g_unit
    while g * h < 256:
        g *= 2
    g = min(g, _cdiv(n_img, g_unit) * g_unit)   # don't pad wastefully
    g = max(g, g_unit)
    n_img_p = _cdiv(n_img, g) * g
    pad_imgs = n_img_p - n_img
    gh = g * h
    grid = n_img_p // g

    bh = jnp.asarray(np.kron(np.eye(g), ch_np), dtype=jnp.float32)   # (G*H, G*H)
    cwt = jnp.asarray(cwt_np, dtype=jnp.float32)                     # (W, W)

    # (B, C, H, W) -> (n_img_p*H, W): leading-dim merges only (layout trivial).
    x3 = x.reshape(n_img, h, w)
    y3 = y.reshape(n_img, h, w)
    if pad_imgs:
        x3 = jnp.pad(x3, ((0, pad_imgs), (0, 0), (0, 0)))
        y3 = jnp.pad(y3, ((0, pad_imgs), (0, 0), (0, 0)))
    x2 = x3.reshape(n_img_p * h, w)
    y2 = y3.reshape(n_img_p * h, w)

    out = pl.pallas_call(
        _edge_kernel,
        out_shape=jax.ShapeDtypeStruct((1, w), jnp.float32),
        grid_spec=pltpu.PrefetchScalarGridSpec(
            num_scalar_prefetch=0,
            grid=(grid,),
            in_specs=[
                pl.BlockSpec((gh, w), lambda i: (i, 0)),
                pl.BlockSpec((gh, w), lambda i: (i, 0)),
                pl.BlockSpec((gh, gh), lambda i: (0, 0)),   # resident operator
                pl.BlockSpec((w, w), lambda i: (0, 0)),     # resident operator
            ],
            out_specs=pl.BlockSpec((1, w), lambda i: (0, 0)),
        ),
        compiler_params=pltpu.CompilerParams(
            dimension_semantics=("arbitrary",)),
    )(x2, y2, bh, cwt)

    total = jnp.sum(out)
    if pad_imgs:
        # zero-padded images contribute sqrt(eps^2) = eps per pixel; remove.
        total = total - jnp.float32(pad_imgs * h * w * _CHARB_EPS)
    return total / jnp.float32(n)


# ----------------------------------------------------------------------------
# loss registry + module (wrappers are jitted so pad/reshape/epilogue fuse)
# ----------------------------------------------------------------------------
_LOSS_FNS = {
    "MSE": jax.jit(_pointwise_loss(lambda d: d * d, 0.0)),
    "L1": jax.jit(_pointwise_loss(lambda d: jnp.abs(d), 0.0)),
    "Charbonnier": jax.jit(_pointwise_loss(
        lambda d: jnp.sqrt(d * d + _CHARB_EPS2), _CHARB_EPS)),
    "PSNR": jax.jit(_psnr_loss),
    "Edge": jax.jit(_edge_loss),
}


class Losses:
    """JAX/Pallas equivalent of the PyTorch `Losses` nn.Module."""

    def __init__(self, types, weights):
        assert len(types) == len(weights)
        for t in types:
            if t not in _LOSS_FNS:
                raise NotImplementedError(f"loss type {t!r} not supported")
        self.types = list(types)
        self.weights = list(weights)

    def __len__(self):
        return len(self.types)

    def __call__(self, preds, gts):
        losses = []
        for t, w, p, g in zip(self.types, self.weights, preds, gts):
            losses.append(_LOSS_FNS[t](p, g) * jnp.float32(w))
        return losses


# ----------------------------------------------------------------------------
# numpy references (for self-check only)
# ----------------------------------------------------------------------------
def _np_conv_gauss(img):
    ker = np.outer(_GAUSS_K, _GAUSS_K)
    _, _, hh, ww = img.shape
    p = np.pad(img, ((0, 0), (0, 0), (2, 2), (2, 2)), mode="edge")
    out = np.zeros_like(img)
    for i in range(5):
        for j in range(5):
            out += ker[i, j] * p[:, :, i:i + hh, j:j + ww]
    return out


def _np_laplacian(img):
    f = _np_conv_gauss(img)
    nf = np.zeros_like(f)
    nf[:, :, ::2, ::2] = f[:, :, ::2, ::2] * 4.0
    return img - _np_conv_gauss(nf)


def _np_loss(t, x, y):
    d = x - y
    if t == "MSE":
        return float(np.mean(d * d))
    if t == "L1":
        return float(np.mean(np.abs(d)))
    if t == "Charbonnier":
        return float(np.mean(np.sqrt(d * d + _CHARB_EPS2)))
    if t == "PSNR":
        mse_b = np.mean(d * d, axis=(1, 2, 3))
        return float(_PSNR_SCALE * np.mean(np.log(mse_b + 1e-8)))
    if t == "Edge":
        ed = _np_laplacian(x) - _np_laplacian(y)
        return float(np.mean(np.sqrt(ed * ed + _CHARB_EPS2)))
    raise ValueError(t)


# ----------------------------------------------------------------------------
# demo
# ----------------------------------------------------------------------------
if __name__ == "__main__":
    key = jax.random.PRNGKey(0)
    types = ["MSE", "L1", "PSNR", "Charbonnier", "Edge"]
    weights = [1.0, 0.5, 0.1, 1.0, 2.0]

    B, C, H, W = 2, 4, 16, 16   # Edge loss requires 4 channels (depthwise)
    preds, gts = [], []
    for _ in types:
        key, k1, k2 = jax.random.split(key, 3)
        preds.append(jax.random.uniform(k1, (B, C, H, W), dtype=jnp.float32))
        gts.append(jax.random.uniform(k2, (B, C, H, W), dtype=jnp.float32))

    losses_mod = Losses(types, weights)
    losses = losses_mod(preds, gts)
    losses = [jax.block_until_ready(l) for l in losses]

    for t, wgt, p, g, l in zip(types, weights, preds, gts, losses):
        got = float(l)
        assert np.isfinite(got), f"{t} loss is not finite"
        ref = _np_loss(t, np.asarray(p, np.float64), np.asarray(g, np.float64))
        ref *= wgt
        rtol = 3e-2 if t == "Edge" else 5e-3
        assert abs(got - ref) <= rtol * max(abs(ref), 1e-3), \
            f"{t}: got {got}, ref {ref}"

    print("KERNEL_OK")
</pallas_src>

<mosaic_0001>
module attributes {stable_mosaic.version = 11 : i64} {
  func.func @kernel(%arg0: i32, %arg1: memref<4x512xf32, #tpu.memory_space<vmem>>, %arg2: memref<4x512xf32, #tpu.memory_space<vmem>>, %arg3: memref<1x512xf32, #tpu.memory_space<vmem>>) attributes {dimension_semantics = [#tpu.dimension_semantics<arbitrary>], iteration_bounds = array<i64: 1>, scalar_prefetch = 0 : i64, scratch_operands = 0 : i64, tpu.core_type = #tpu.core_type<tc>, window_params = [{transform_indices = @transform_0, window_bounds = array<i64: 4, 512>}, {transform_indices = @transform_1, window_bounds = array<i64: 4, 512>}, {pipeline_mode = #tpu.pipeline_mode<synchronous>, transform_indices = @transform_2, window_bounds = array<i64: 1, 512>}]} {
    %c0_i32 = arith.constant 0 : i32
    %0 = arith.cmpi eq, %arg0, %c0_i32 : i32
    %1 = arith.extui %0 : i1 to i32
    %c0_i32_0 = arith.constant 0 : i32
    %2 = arith.cmpi ne, %1, %c0_i32_0 : i32
    scf.if %2 {
      %cst_8 = arith.constant 0.000000e+00 : f32
      %12 = vector.broadcast %cst_8 : f32 to vector<1x512xf32>
      %c0_9 = arith.constant 0 : index
      %c0_10 = arith.constant 0 : index
      %13 = vector.load %arg3[%c0_9, %c0_10] : memref<1x512xf32, #tpu.memory_space<vmem>>, vector<1x512xf32>
      tpu.vector_store %arg3[%c0_9, %c0_10], %12 {strides = array<i32>} : memref<1x512xf32, #tpu.memory_space<vmem>>, vector<1x512xf32>,
    } else {
    }
    %c0 = arith.constant 0 : index
    %c0_1 = arith.constant 0 : index
    %3 = vector.load %arg1[%c0, %c0_1] : memref<4x512xf32, #tpu.memory_space<vmem>>, vector<4x512xf32>
    %c0_2 = arith.constant 0 : index
    %c0_3 = arith.constant 0 : index
    %4 = vector.load %arg2[%c0_2, %c0_3] : memref<4x512xf32, #tpu.memory_space<vmem>>, vector<4x512xf32>
    %5 = arith.subf %3, %4 : vector<4x512xf32>
    %c0_4 = arith.constant 0 : index
    %c0_5 = arith.constant 0 : index
    %6 = vector.load %arg3[%c0_4, %c0_5] : memref<1x512xf32, #tpu.memory_space<vmem>>, vector<1x512xf32>
    %7 = arith.mulf %5, %5 : vector<4x512xf32>
    %cst = arith.constant dense<0.000000e+00> : vector<512xf32>
    %8 = vector.multi_reduction <add>, %7, %cst [0] : vector<4x512xf32> to vector<512xf32>
    %9 = vector.shape_cast %8 : vector<512xf32> to vector<1x512xf32>
    %10 = arith.addf %6, %9 : vector<1x512xf32>
    %c0_6 = arith.constant 0 : index
    %c0_7 = arith.constant 0 : index
    %11 = vector.load %arg3[%c0_6, %c0_7] : memref<1x512xf32, #tpu.memory_space<vmem>>, vector<1x512xf32>
    tpu.vector_store %arg3[%c0_6, %c0_7], %10 {strides = array<i32>} : memref<1x512xf32, #tpu.memory_space<vmem>>, vector<1x512xf32>,
    return
  }
  func.func @transform_0(%arg0: i32) -> (i32, i32) {
    %c0_i32 = arith.constant 0 : i32
    %c0_i32_0 = arith.constant 0 : i32
    return %arg0, %c0_i32 : i32, i32
  }
  func.func @transform_1(%arg0: i32) -> (i32, i32) {
    %c0_i32 = arith.constant 0 : i32
    %c0_i32_0 = arith.constant 0 : i32
    return %arg0, %c0_i32 : i32, i32
  }
  func.func @transform_2(%arg0: i32) -> (i32, i32) {
    %c0_i32 = arith.constant 0 : i32
    %c0_i32_0 = arith.constant 0 : i32
    %c0_i32_1 = arith.constant 0 : i32
    return %c0_i32, %c0_i32_0 : i32, i32
  }
}

</mosaic_0001>

<llo_original>
// kernel: call.1
$region0: #{call.1}
  #allocation0 [shape = 'u32[]', space=smem, size = 0x4, offset = 0x4, fixed_abs, tag = 'smem constant byte address 0x4 - core index']
  #allocation1 [shape = 'u32[72,128]{1,0:T(1,128)}', space=vmem, size = 0x9000, scoped, tag = 'internal scratch']
  %s0 = inlined_call_operand.vmem [shape: f32[4,512], index: 0, kind: input, shape index: {}]
  %s1 = inlined_call_operand.vmem [shape: f32[4,512], index: 1, kind: input, shape index: {}]
  %s2 = inlined_call_operand.vmem [shape: f32[1,512], index: 2, kind: output, shape index: {}]
  %s3 = sld [smem:[#allocation0]]
  $region22: #{call.1} parent=0
    _
  %s5 = ssub.s32 1, %s3
  %s6 = scalar_select 0, %s5, %s3
  // Predicated region
  $region2: #{call.1} parent=0 // pred_check
    _
  $region3: #{call.1} parent=0 // pred_check_branch
    %8 = sbr.rel (0) target = $region5
  $region4: #{call.1} parent=0 // pred_region
    _
  $region5: #{call.1} parent=0 // pred_fallthru
    _
  // Predicated region
  $region6: #{call.1} parent=0 // pred_check
    _
  $region7: #{call.1} parent=0 // pred_check_branch
    %10 = sbr.rel (0) target = $region9
  $region8: #{call.1} parent=0 // pred_region
    _
  $region9: #{call.1} parent=0 // pred_fallthru
    _
  %p11 = scmp.eq.s32.totalorder 0, 0
  // Predicated region
  $region10: #{call.1} parent=0 // pred_check
    %p12 = pneg %p11
  $region11: #{call.1} parent=0 // pred_check_branch
    %14 = sbr.rel (%p12) target = $region13
  $region12: #{call.1} parent=0 // pred_region
    %v15 = vlaneseq
    %vm16 = vcmp.ge.s32.totalorder %v15, 0
    %vm17 = vcmp.lt.s32.totalorder %v15, 512
    %vm18 = vmand %vm16, %vm17
    %19 = vst.msk [vmem:[%s2] sm:$0xf] %vm18, 0.0
  $region13: #{call.1} parent=0 // pred_fallthru
    _
  %v20 = vld [vmem:[%s0] sm:$0xff]
  %v21 = vld [vmem:[%s0 + $0x8] sm:$0xff]
  %v22 = vld [vmem:[%s1] sm:$0xff]
  %v23 = vld [vmem:[%s1 + $0x8] sm:$0xff]
  %v24 = vsub.f32 %v20, %v22
  %v25 = vsub.f32 %v21, %v23
  %v26 = vld [vmem:[%s2] sm:$0xf]
  %v27 = vmul.f32 %v24, %v24
  %v28 = vmul.f32 %v25, %v25
  %31 = vst [vmem:[#allocation1] ss:$2 sm:$0xff] %v27
  %s32 = scalar_lea.vmem [#allocation1], 16
  %33 = vst [vmem:[%s32] ss:$2 sm:$0xff] %v28
  %v34 = vld.sshfl [vmem:[#allocation1] sm:$0xff pattern:$0x75316420]
  %v35 = vld.sshfl [vmem:[#allocation1 + $0x8] sm:$0xff pattern:$0x75316420]
  %v36 = vld.sshfl [vmem:[#allocation1 + $0x10] sm:$0xff pattern:$0x75316420]
  %v37 = vld.sshfl [vmem:[#allocation1 + $0x18] sm:$0xff pattern:$0x75316420]
  %vm42 = vcmask 1043456
  %v43 = vsel %vm42, %v34, 0.0
  %v44 = vrot.slane %v43, 4
  %v45 = vadd.f32 %v43, %v44
  %v46 = vrot.slane %v45, 2
  %v47 = vadd.f32 %v45, %v46
  %v48 = vrot.slane %v47, 1
  %v49 = vadd.f32 %v47, %v48
  %v50 = vsel %vm42, %v35, 0.0
  %v51 = vrot.slane %v50, 4
  %v52 = vadd.f32 %v50, %v51
  %v53 = vrot.slane %v52, 2
  %v54 = vadd.f32 %v52, %v53
  %v55 = vrot.slane %v54, 1
  %v56 = vadd.f32 %v54, %v55
  %v57 = vsel %vm42, %v36, 0.0
  %v58 = vrot.slane %v57, 4
  %v59 = vadd.f32 %v57, %v58
  %v60 = vrot.slane %v59, 2
  %v61 = vadd.f32 %v59, %v60
  %v62 = vrot.slane %v61, 1
  %v63 = vadd.f32 %v61, %v62
  %v64 = vsel %vm42, %v37, 0.0
  %v65 = vrot.slane %v64, 4
  %v66 = vadd.f32 %v64, %v65
  %v67 = vrot.slane %v66, 2
  %v68 = vadd.f32 %v66, %v67
  %v69 = vrot.slane %v68, 1
  %v70 = vadd.f32 %v68, %v69
  %v75 = vrot.slane %v56, 7
  %v76 = vrot.slane %v63, 6
  %v77 = vrot.slane %v70, 5
  %vm78 = vcmask 1040384
  %v79 = vsel %vm78, %v49, %v75
  %vm80 = vcmask 1042434
  %v81 = vsel %vm80, %v76, %v77
  %vm82 = vcmask 1041408
  %v83 = vsel %vm82, %v79, %v81
  %v85 = vadd.f32 %v26, %v83
  %v86 = vlaneseq
  %vm87 = vcmp.ge.s32.totalorder %v86, 0
  %vm88 = vcmp.lt.s32.totalorder %v86, 512
  %vm89 = vmand %vm87, %vm88
  %90 = vst.msk [vmem:[%s2] sm:$0xf] %vm89, %v85
  // Predicated region
  $region14: #{call.1} parent=0 // pred_check
    _
  $region15: #{call.1} parent=0 // pred_check_branch
    %92 = sbr.rel (0) target = $region17
  $region16: #{call.1} parent=0 // pred_region
    _
  $region17: #{call.1} parent=0 // pred_fallthru
    _
  // Predicated region
  $region18: #{call.1} parent=0 // pred_check
    _
  $region19: #{call.1} parent=0 // pred_check_branch
    %94 = sbr.rel (0) target = $region21
  $region20: #{call.1} parent=0 // pred_region
    _
  $region21: #{call.1} parent=0 // pred_fallthru
    _

</llo_original>
